<compile_context>
chip_gen: v5e
topology: v5e:2x2
jax: 0.10.0
libtpu: 0.0.40
codegen_flags: <defaults>
</compile_context>

<pallas_src>
import jax
import jax.numpy as jnp
from jax.experimental import pallas as pl
from jax.experimental.pallas import tpu as pltpu


# Only bother splitting the DMA into multiple chunks for arrays at least this
# large; below that a single DMA already amortizes its setup cost.
_CHUNK_BYTES_THRESHOLD = 4 * 1024 * 1024
_MAX_DMA_CHUNKS = 4


def identity(x: jax.Array) -> jax.Array:
    """Identity.forward(x) -> x.  No kernel, no copy, zero HBM traffic."""
    return x


def _make_hbm_copy_kernel(chunk_bounds):
    """Kernel that copies src→dst entirely with HBM→HBM DMAs.

    chunk_bounds: static tuple of (start, size) python ints along dim 0.
    """

    def kernel(x_hbm, o_hbm, sems):
        copies = []
        # Start every chunk's DMA first so they overlap across DMA engines,
        # then wait on all of them.
        for c, (start, size) in enumerate(chunk_bounds):
            cp = pltpu.make_async_copy(
                x_hbm.at[pl.ds(start, size)],
                o_hbm.at[pl.ds(start, size)],
                sems.at[c],
            )
            cp.start()
            copies.append(cp)
        for cp in copies:
            cp.wait()

    return kernel


def identity_copy(x: jax.Array, *, chunks: int | None = None) -> jax.Array:
    """Materialized identity copy via direct HBM→HBM DMA (TensorCore stays free).

    Always returns a distinct output buffer (never aliases the input).
    `chunks` optionally forces the number of DMA chunks (testing / tuning).
    """
    if x.size == 0:
        # TODO(synk): Pallas cannot express a zero-element DMA; let XLA copy.
        return jnp.copy(x)

    # 0-d arrays: give the DMA a 1-d view.
    x_op = x.reshape((1,)) if x.ndim == 0 else x
    lead = x_op.shape[0]
    nbytes = x_op.size * x_op.dtype.itemsize

    if chunks is not None:
        n_chunks = max(1, min(int(chunks), lead))
    elif nbytes >= _CHUNK_BYTES_THRESHOLD and lead >= 2:
        n_chunks = min(_MAX_DMA_CHUNKS, lead)
    else:
        n_chunks = 1

    # Static chunk bounds along the leading dim (contiguous slabs).
    base, rem = divmod(lead, n_chunks)
    bounds = []
    start = 0
    for c in range(n_chunks):
        size = base + (1 if c < rem else 0)
        bounds.append((start, size))
        start += size
    bounds = tuple(bounds)

    out = pl.pallas_call(
        _make_hbm_copy_kernel(bounds),
        out_shape=jax.ShapeDtypeStruct(x_op.shape, x_op.dtype),
        in_specs=[pl.BlockSpec(memory_space=pl.ANY)],   # stay in HBM, no auto-DMA
        out_specs=pl.BlockSpec(memory_space=pl.ANY),    # stay in HBM, we DMA into it
        scratch_shapes=[pltpu.SemaphoreType.DMA((n_chunks,))],
    )(x_op)

    return out.reshape(x.shape)


if __name__ == "__main__":
    key = jax.random.PRNGKey(0)

    # Small NCHW input consistent with typical conv-style usage.
    x = jax.random.normal(key, (2, 4, 16, 16), dtype=jnp.float32)

    # Production path: true identity — zero-cost passthrough.
    y = identity(x)
    jax.block_until_ready(y)
    assert y.shape == x.shape and y.dtype == x.dtype
    assert bool(jnp.array_equal(y, x))

    # Pallas materialized-copy path: single HBM→HBM DMA.
    y_copy = identity_copy(x)
    jax.block_until_ready(y_copy)
    assert y_copy.shape == x.shape and y_copy.dtype == x.dtype
    assert bool(jnp.array_equal(y_copy, x))

    # Exercise the multi-chunk DMA path (overlapping DMAs, per-chunk semaphores).
    x2 = jax.random.normal(key, (8, 128, 128), dtype=jnp.float32)
    y2 = identity_copy(x2, chunks=2)
    jax.block_until_ready(y2)
    assert y2.shape == x2.shape and y2.dtype == x2.dtype
    assert bool(jnp.array_equal(y2, x2))

    # Ragged (non-multiple-of-128) shape: the DMA path needs no padding/masking.
    x3 = jax.random.normal(key, (3, 5, 7), dtype=jnp.float32)
    y3 = identity_copy(x3)
    jax.block_until_ready(y3)
    assert y3.shape == x3.shape and y3.dtype == x3.dtype
    assert bool(jnp.array_equal(y3, x3))

    print("KERNEL_OK")
</pallas_src>

<mosaic_0001>
module attributes {stable_mosaic.version = 11 : i64} {
  func.func @kernel(%arg0: memref<2x4x16x16xf32, #tpu.memory_space<any>>, %arg1: memref<2x4x16x16xf32, #tpu.memory_space<any>>, %arg2: memref<1x!tpu.dma_semaphore, #tpu.memory_space<semaphore_mem>>) attributes {dimension_semantics = [], scalar_prefetch = 0 : i64, scratch_operands = 1 : i64, tpu.core_type = #tpu.core_type<tc>} {
    %c0_i32 = arith.constant 0 : i32
    %c0_i32_0 = arith.constant 0 : i32
    %c0_i32_1 = arith.constant 0 : i32
    %c0_i32_2 = arith.constant 0 : i32
    %c0_i32_3 = arith.constant 0 : i32
    %0 = tpu.memref_slice %arg0[%c0_i32_0, %c0_i32_1, %c0_i32_2, %c0_i32_3] : memref<2x4x16x16xf32, #tpu.memory_space<any>> -> memref<2x4x16x16xf32, #tpu.memory_space<any>>
    %c0_i32_4 = arith.constant 0 : i32
    %c0_i32_5 = arith.constant 0 : i32
    %c0_i32_6 = arith.constant 0 : i32
    %c0_i32_7 = arith.constant 0 : i32
    %1 = tpu.memref_slice %arg1[%c0_i32_4, %c0_i32_5, %c0_i32_6, %c0_i32_7] : memref<2x4x16x16xf32, #tpu.memory_space<any>> -> memref<2x4x16x16xf32, #tpu.memory_space<any>>
    %2 = tpu.memref_slice %arg2[%c0_i32] : memref<1x!tpu.dma_semaphore, #tpu.memory_space<semaphore_mem>> -> memref<1x!tpu.dma_semaphore, #tpu.memory_space<semaphore_mem>>
    %3 = tpu.memref_squeeze %2 : memref<1x!tpu.dma_semaphore, #tpu.memory_space<semaphore_mem>> -> memref<!tpu.dma_semaphore, #tpu.memory_space<semaphore_mem>>
    tpu.enqueue_dma source(%0 : memref<2x4x16x16xf32, #tpu.memory_space<any>>) target(%1 : memref<2x4x16x16xf32, #tpu.memory_space<any>>) target_semaphore(%3 : memref<!tpu.dma_semaphore, #tpu.memory_space<semaphore_mem>>)
    %c0_i32_8 = arith.constant 0 : i32
    %c0_i32_9 = arith.constant 0 : i32
    %c0_i32_10 = arith.constant 0 : i32
    %c0_i32_11 = arith.constant 0 : i32
    %c0_i32_12 = arith.constant 0 : i32
    %4 = tpu.memref_slice %arg0[%c0_i32_9, %c0_i32_10, %c0_i32_11, %c0_i32_12] : memref<2x4x16x16xf32, #tpu.memory_space<any>> -> memref<2x4x16x16xf32, #tpu.memory_space<any>>
    %c0_i32_13 = arith.constant 0 : i32
    %c0_i32_14 = arith.constant 0 : i32
    %c0_i32_15 = arith.constant 0 : i32
    %c0_i32_16 = arith.constant 0 : i32
    %5 = tpu.memref_slice %arg1[%c0_i32_13, %c0_i32_14, %c0_i32_15, %c0_i32_16] : memref<2x4x16x16xf32, #tpu.memory_space<any>> -> memref<2x4x16x16xf32, #tpu.memory_space<any>>
    %6 = tpu.memref_slice %arg2[%c0_i32_8] : memref<1x!tpu.dma_semaphore, #tpu.memory_space<semaphore_mem>> -> memref<1x!tpu.dma_semaphore, #tpu.memory_space<semaphore_mem>>
    %7 = tpu.memref_squeeze %6 : memref<1x!tpu.dma_semaphore, #tpu.memory_space<semaphore_mem>> -> memref<!tpu.dma_semaphore, #tpu.memory_space<semaphore_mem>>
    tpu.wait_dma2 semaphore(%7 : memref<!tpu.dma_semaphore, #tpu.memory_space<semaphore_mem>>) src(%4 : memref<2x4x16x16xf32, #tpu.memory_space<any>>) dst(%5 : memref<2x4x16x16xf32, #tpu.memory_space<any>>)
    return
  }
}

</mosaic_0001>

<llo_original>
// kernel: tpu_custom_call.1
$region0: #{tpu_custom_call.1}
  #allocation0 [shape = 'u32[]', space=smem, size = 0x4, offset = 0x4, fixed_abs, tag = 'smem constant byte address 0x4 - core index']
  #allocation1 [shape = 'u32[72,128]{1,0:T(1,128)}', space=vmem, size = 0x9000, scoped, tag = 'internal scratch']
  #allocation2 [shape = 's32[1]{0}', space=sflag, size = 0x4, scoped, tag = 'scratch operand']
  #allocation3 [shape = 's32[]', space=sflag, size = 0x4, offset = 0, fixed_abs, tag = 'sflag constant byte address 0x0 - dummy sync flag']
  #allocation4 [shape = 'u32[0]{0}', space=smem, size = 0, offset = 0, fixed_abs, tag = 'smem constant byte address 0x0 - null']
  %s0 = inlined_call_operand.hbm [shape: f32[2,4,16,16], index: 0, kind: input, shape index: {}]
  %s1 = inlined_call_operand.hbm [shape: f32[2,4,16,16], index: 1, kind: output, shape index: {}]
  %s2 = sld [smem:[#allocation0]]
  $region2: #{tpu_custom_call.1} parent=0
    _
  %s4 = ssub.s32 1, %s2
  %s5 = scalar_select 0, %s4, %s2
  %s7 = sshll.u32 1, 14
  %s8 = sxor.u32 4294967295, %s7
  %s10 = sshll.u32 %s0, 4
  %s11 = int_to_ptr.hbm [resolvable:$true] %s10
  %s12 = sshll.u32 %s1, 4
  %s13 = int_to_ptr.hbm [resolvable:$true] %s12
  %16 = dma.general %s11, 2048, %s13, [#allocation2], [#allocation3], [#allocation4], 0, 0
  %s17 = smul.u32 2, 4
  %s18 = smul.u32 %s17, 16
  %s19 = smul.u32 %s18, 1
  %s20 = sshll.u32 %s19, 4
  %21 = dma.done [#allocation2], %s20
  %22 = vsyncmov [#allocation2]
  %s23 = vpop.sfrf %22
  %p24 = scmp.eq.s32.totalorder %s23, 0
  %p25 = pneg %p24
  %27 = shalt.err (%p25)

</llo_original>
